<compile_context>
chip_gen: v5e
topology: v5e:2x2
jax: 0.10.0
libtpu: 0.0.40
codegen_flags: <defaults>
</compile_context>

<pallas_src>
import functools
import math

import jax
import jax.numpy as jnp
from jax.experimental import pallas as pl
from jax.experimental.pallas import tpu as pltpu


def _round_up(n, m):
    return ((n + m - 1) // m) * m


def _qvalue_kernel(x_ref, a_ref,
                   wq_ref, bq_ref, wk_ref, bk_ref, wv_ref, bv_ref,
                   w1x_ref, w1a_ref, b1_ref, w2_ref, b2_ref,
                   wo_ref, bo_ref,
                   out_ref, *, n_oppo, feat):
    f32 = jnp.float32
    bf16 = jnp.bfloat16

    xf = x_ref[...]                       # (TB, (1+N)*D) flat per-row state, f32
    act = a_ref[...]                      # (TB, A)                           f32

    wq = wq_ref[...]                      # (D, E) bf16
    wk = wk_ref[...]                      # (D, E) bf16
    wv = wv_ref[...]                      # (D, E) bf16
    bk = bk_ref[...]                      # (1, E) f32
    bv = bv_ref[...]                      # (1, E) f32
    embed_dim = wq.shape[-1]
    scale = 1.0 / math.sqrt(float(embed_dim))

    # ---------------- Attention: ego queries the opponent set ----------------
    ego = xf[:, :feat].astype(bf16)                                       # lane slice
    q = jnp.dot(ego, wq, preferred_element_type=f32) + bq_ref[...]        # (TB, E)

    # Per-opponent k/v projections on the MXU (N is small and static); every
    # intermediate stays 2-D -- no 3/4-D broadcasts, no in-kernel reshapes.
    scores = []
    values = []
    for n in range(n_oppo):
        o_n = xf[:, (n + 1) * feat:(n + 2) * feat].astype(bf16)           # (TB, D)
        k_n = jnp.dot(o_n, wk, preferred_element_type=f32) + bk           # (TB, E)
        v_n = jnp.dot(o_n, wv, preferred_element_type=f32) + bv           # (TB, E)
        scores.append(jnp.sum(q * k_n, axis=-1, keepdims=True) * scale)   # (TB, 1)
        values.append(v_n)

    # Numerically stable softmax over the static opponent axis, column-wise.
    m = scores[0]
    for s in scores[1:]:
        m = jnp.maximum(m, s)
    exps = [jnp.exp(s - m) for s in scores]
    denom = exps[0]
    for e in exps[1:]:
        denom = denom + e
    inv = pl.reciprocal(denom, approx=True)                               # EUP slot

    attn = (exps[0] * inv) * values[0]
    for e, v_n in zip(exps[1:], values[1:]):
        attn = attn + (e * inv) * v_n                                     # (TB, E)

    # ---------------- MLP head: relu(fc) x2, then fc_out ---------------------
    h = (jnp.dot(attn.astype(bf16), w1x_ref[...], preferred_element_type=f32)
         + jnp.dot(act.astype(bf16), w1a_ref[...], preferred_element_type=f32)
         + b1_ref[...])
    h = jnp.maximum(h, 0.0)
    h = jnp.dot(h.astype(bf16), w2_ref[...], preferred_element_type=f32) + b2_ref[...]
    h = jnp.maximum(h, 0.0)

    # Final (H -> 1) layer as VPU multiply + lane reduce (skips an N=1 MXU
    # matmul).  Output stays (TB, 1); it is tiny, the masked store is fine.
    out_ref[...] = jnp.sum(h * wo_ref[...], axis=-1, keepdims=True) + bo_ref[...]


def qvalue_forward(x, a, params, *, tile_b=256):
    """Batched branch of QValueNet.forward (len(x.shape) > 2)."""
    B, S, D = x.shape           # S = 1 + n_oppo
    n_oppo = S - 1
    A = a.shape[-1]

    # Flatten the state to (B, S*D): a contiguous reshape (no extra HBM copy),
    # so ego / opponent rows are lane slices inside the kernel.
    xf = x.reshape(B, S * D).astype(jnp.float32)
    a = a.astype(jnp.float32)

    # Batch tile: >=256 rows keeps the MXU busy at realistic batch sizes; for
    # tiny batches clamp to a multiple of 8 (sublane granularity).
    tb = min(tile_b, _round_up(B, 8))
    b_pad = _round_up(B, tb)
    if b_pad != B:               # zero rows are harmless; outputs sliced away
        xf = jnp.pad(xf, ((0, b_pad - B), (0, 0)))
        a = jnp.pad(a, ((0, b_pad - B), (0, 0)))

    bf16 = jnp.bfloat16
    f32 = jnp.float32
    # bf16 weights for the MXU matmuls; biases (VPU adds) stay f32 (v5e-safe).
    weights = (
        params["wq"].astype(bf16), params["bq"].astype(f32),
        params["wk"].astype(bf16), params["bk"].astype(f32),
        params["wv"].astype(bf16), params["bv"].astype(f32),
        params["w1x"].astype(bf16), params["w1a"].astype(bf16),
        params["b1"].astype(f32),
        params["w2"].astype(bf16), params["b2"].astype(f32),
        params["wo"].astype(f32).reshape(1, -1),   # (1, H) lane row for the VPU reduce
        params["bo"].astype(f32),
    )

    def batch_spec(cols):
        return pl.BlockSpec((tb, cols), lambda i: (i, 0))

    def const_spec(arr):
        # Full block + constant index_map: DMA'd once, VMEM-resident across grid.
        return pl.BlockSpec(arr.shape, lambda i: (0, 0))

    kernel = functools.partial(_qvalue_kernel, n_oppo=n_oppo, feat=D)

    out = pl.pallas_call(
        kernel,
        out_shape=jax.ShapeDtypeStruct((b_pad, 1), jnp.float32),
        grid=(b_pad // tb,),
        in_specs=[batch_spec(S * D), batch_spec(A)] + [const_spec(w) for w in weights],
        out_specs=pl.BlockSpec((tb, 1), lambda i: (i, 0)),
        compiler_params=pltpu.CompilerParams(
            dimension_semantics=("parallel",)),
    )(xf, a, *weights)
    return out[:B]


def qvalue_reference(x, a, params):
    """Pure-JAX f32 reference of the same forward pass (for validation)."""
    ego, oppo = x[:, 0, :], x[:, 1:, :]
    q = ego @ params["wq"] + params["bq"]
    k = jnp.einsum("bnd,de->bne", oppo, params["wk"]) + params["bk"]
    v = jnp.einsum("bnd,de->bne", oppo, params["wv"]) + params["bv"]
    s = jnp.einsum("be,bne->bn", q, k) / math.sqrt(q.shape[-1])
    p = jax.nn.softmax(s, axis=-1)
    attn = jnp.einsum("bn,bne->be", p, v)
    h = jnp.maximum(attn @ params["w1x"] + a @ params["w1a"] + params["b1"], 0.0)
    h = jnp.maximum(h @ params["w2"] + params["b2"], 0.0)
    return h @ params["wo"] + params["bo"]


def init_params(key, ego_dim, oppo_dim, embed_dim, action_dim, hidden_dim):
    """Deterministic PyTorch-Linear-style init: U(-1/sqrt(fan_in), 1/sqrt(fan_in))."""
    def linear(k, fan_in, fan_out):
        kw, kb = jax.random.split(k)
        bound = 1.0 / math.sqrt(fan_in)
        w = jax.random.uniform(kw, (fan_in, fan_out), jnp.float32, -bound, bound)
        b = jax.random.uniform(kb, (1, fan_out), jnp.float32, -bound, bound)
        return w, b

    keys = jax.random.split(key, 6)
    wq, bq = linear(keys[0], ego_dim, embed_dim)
    wk, bk = linear(keys[1], oppo_dim, embed_dim)
    wv, bv = linear(keys[2], oppo_dim, embed_dim)

    # fc[0]: (embed_dim + action_dim) -> hidden_dim[0], split into state/action parts
    w1, b1 = linear(keys[3], embed_dim + action_dim, hidden_dim[0])
    w1x, w1a = w1[:embed_dim, :], w1[embed_dim:, :]
    # fc[1]: hidden_dim[0] -> hidden_dim[1]
    w2, b2 = linear(keys[4], hidden_dim[0], hidden_dim[1])
    # fc_out: hidden_dim[-1] -> 1
    wo, bo = linear(keys[5], hidden_dim[1], 1)

    return dict(wq=wq, bq=bq, wk=wk, bk=bk, wv=wv, bv=bv,
                w1x=w1x, w1a=w1a, b1=b1, w2=w2, b2=b2, wo=wo, bo=bo)


if __name__ == "__main__":
    B, N_OPPO, FEAT = 2, 3, 4          # x: (B, 1 + N_OPPO, FEAT)
    ACTION_DIM = 2
    EMBED_DIM = 32                     # Attention.embed_dim (assumption)
    HIDDEN = [32, 32]                  # hidden_dim list of QValueNet

    key = jax.random.PRNGKey(0)
    kx, ka, kp = jax.random.split(key, 3)
    x = jax.random.normal(kx, (B, 1 + N_OPPO, FEAT), jnp.float32)
    a = jax.random.normal(ka, (B, ACTION_DIM), jnp.float32)
    params = init_params(kp, FEAT, FEAT, EMBED_DIM, ACTION_DIM, HIDDEN)

    q_val = qvalue_forward(x, a, params)
    jax.block_until_ready(q_val)
    assert q_val.shape == (B, 1) and q_val.dtype == jnp.float32

    # Loose tolerance: kernel uses bf16 MXU matmuls with f32 accumulation.
    q_ref = qvalue_reference(x, a, params)
    assert jnp.allclose(q_val, q_ref, rtol=1e-1, atol=1e-1), (q_val, q_ref)

    print("KERNEL_OK")
</pallas_src>

<mosaic_0001>
module attributes {stable_mosaic.version = 11 : i64} {
  func.func @_qvalue_kernel(%arg0: i32, %arg1: memref<8x16xf32, #tpu.memory_space<vmem>>, %arg2: memref<8x2xf32, #tpu.memory_space<vmem>>, %arg3: memref<4x32xbf16, #tpu.memory_space<vmem>>, %arg4: memref<1x32xf32, #tpu.memory_space<vmem>>, %arg5: memref<4x32xbf16, #tpu.memory_space<vmem>>, %arg6: memref<1x32xf32, #tpu.memory_space<vmem>>, %arg7: memref<4x32xbf16, #tpu.memory_space<vmem>>, %arg8: memref<1x32xf32, #tpu.memory_space<vmem>>, %arg9: memref<32x32xbf16, #tpu.memory_space<vmem>>, %arg10: memref<2x32xbf16, #tpu.memory_space<vmem>>, %arg11: memref<1x32xf32, #tpu.memory_space<vmem>>, %arg12: memref<32x32xbf16, #tpu.memory_space<vmem>>, %arg13: memref<1x32xf32, #tpu.memory_space<vmem>>, %arg14: memref<1x32xf32, #tpu.memory_space<vmem>>, %arg15: memref<1x1xf32, #tpu.memory_space<vmem>>, %arg16: memref<8x1xf32, #tpu.memory_space<vmem>>) attributes {dimension_semantics = [#tpu.dimension_semantics<parallel>], iteration_bounds = array<i64: 1>, scalar_prefetch = 0 : i64, scratch_operands = 0 : i64, tpu.core_type = #tpu.core_type<tc>, window_params = [{transform_indices = @transform_0, window_bounds = array<i64: 8, 16>}, {transform_indices = @transform_1, window_bounds = array<i64: 8, 2>}, {pipeline_mode = #tpu.pipeline_mode<synchronous>, transform_indices = @transform_2, window_bounds = array<i64: 4, 32>}, {pipeline_mode = #tpu.pipeline_mode<synchronous>, transform_indices = @transform_3, window_bounds = array<i64: 1, 32>}, {pipeline_mode = #tpu.pipeline_mode<synchronous>, transform_indices = @transform_4, window_bounds = array<i64: 4, 32>}, {pipeline_mode = #tpu.pipeline_mode<synchronous>, transform_indices = @transform_5, window_bounds = array<i64: 1, 32>}, {pipeline_mode = #tpu.pipeline_mode<synchronous>, transform_indices = @transform_6, window_bounds = array<i64: 4, 32>}, {pipeline_mode = #tpu.pipeline_mode<synchronous>, transform_indices = @transform_7, window_bounds = array<i64: 1, 32>}, {pipeline_mode = #tpu.pipeline_mode<synchronous>, transform_indices = @transform_8, window_bounds = array<i64: 32, 32>}, {pipeline_mode = #tpu.pipeline_mode<synchronous>, transform_indices = @transform_9, window_bounds = array<i64: 2, 32>}, {pipeline_mode = #tpu.pipeline_mode<synchronous>, transform_indices = @transform_10, window_bounds = array<i64: 1, 32>}, {pipeline_mode = #tpu.pipeline_mode<synchronous>, transform_indices = @transform_11, window_bounds = array<i64: 32, 32>}, {pipeline_mode = #tpu.pipeline_mode<synchronous>, transform_indices = @transform_12, window_bounds = array<i64: 1, 32>}, {pipeline_mode = #tpu.pipeline_mode<synchronous>, transform_indices = @transform_13, window_bounds = array<i64: 1, 32>}, {pipeline_mode = #tpu.pipeline_mode<synchronous>, transform_indices = @transform_14, window_bounds = array<i64: 1, 1>}, {transform_indices = @transform_15, window_bounds = array<i64: 8, 1>}]} {
    %c0 = arith.constant 0 : index
    %c0_0 = arith.constant 0 : index
    %0 = vector.load %arg1[%c0, %c0_0] : memref<8x16xf32, #tpu.memory_space<vmem>>, vector<8x16xf32>
    %c0_1 = arith.constant 0 : index
    %c0_2 = arith.constant 0 : index
    %1 = vector.load %arg2[%c0_1, %c0_2] : memref<8x2xf32, #tpu.memory_space<vmem>>, vector<8x2xf32>
    %c0_3 = arith.constant 0 : index
    %c0_4 = arith.constant 0 : index
    %2 = vector.load %arg3[%c0_3, %c0_4] : memref<4x32xbf16, #tpu.memory_space<vmem>>, vector<4x32xbf16>
    %c0_5 = arith.constant 0 : index
    %c0_6 = arith.constant 0 : index
    %3 = vector.load %arg5[%c0_5, %c0_6] : memref<4x32xbf16, #tpu.memory_space<vmem>>, vector<4x32xbf16>
    %c0_7 = arith.constant 0 : index
    %c0_8 = arith.constant 0 : index
    %4 = vector.load %arg7[%c0_7, %c0_8] : memref<4x32xbf16, #tpu.memory_space<vmem>>, vector<4x32xbf16>
    %c0_9 = arith.constant 0 : index
    %c0_10 = arith.constant 0 : index
    %5 = vector.load %arg6[%c0_9, %c0_10] : memref<1x32xf32, #tpu.memory_space<vmem>>, vector<1x32xf32>
    %c0_11 = arith.constant 0 : index
    %c0_12 = arith.constant 0 : index
    %6 = vector.load %arg8[%c0_11, %c0_12] : memref<1x32xf32, #tpu.memory_space<vmem>>, vector<1x32xf32>
    %7 = vector.extract_strided_slice %0 {offsets = [0, 0], sizes = [8, 4], strides = [1, 1]} : vector<8x16xf32> to vector<8x4xf32>
    %8 = arith.truncf %7 : vector<8x4xf32> to vector<8x4xbf16>
    %cst = arith.constant dense<0.000000e+00> : vector<8x32xf32>
    %9 = tpu.matmul %8, %2, %cst {dimension_numbers = #tpu.dot_dimension_numbers<[1], [0], [0], [1], [0, 0, 1, 1], [], []>} : vector<8x4xbf16>, vector<4x32xbf16>, vector<8x32xf32> -> vector<8x32xf32>
    %c0_13 = arith.constant 0 : index
    %c0_14 = arith.constant 0 : index
    %10 = vector.load %arg4[%c0_13, %c0_14] : memref<1x32xf32, #tpu.memory_space<vmem>>, vector<1x32xf32>
    %11 = vector.broadcast %10 : vector<1x32xf32> to vector<8x32xf32>
    %12 = arith.addf %9, %11 : vector<8x32xf32>
    %13 = vector.extract_strided_slice %0 {offsets = [0, 4], sizes = [8, 4], strides = [1, 1]} : vector<8x16xf32> to vector<8x4xf32>
    %14 = arith.truncf %13 : vector<8x4xf32> to vector<8x4xbf16>
    %cst_15 = arith.constant dense<0.000000e+00> : vector<8x32xf32>
    %15 = tpu.matmul %14, %3, %cst_15 {dimension_numbers = #tpu.dot_dimension_numbers<[1], [0], [0], [1], [0, 0, 1, 1], [], []>} : vector<8x4xbf16>, vector<4x32xbf16>, vector<8x32xf32> -> vector<8x32xf32>
    %16 = vector.broadcast %5 : vector<1x32xf32> to vector<8x32xf32>
    %17 = arith.addf %15, %16 : vector<8x32xf32>
    %cst_16 = arith.constant dense<0.000000e+00> : vector<8x32xf32>
    %18 = tpu.matmul %14, %4, %cst_16 {dimension_numbers = #tpu.dot_dimension_numbers<[1], [0], [0], [1], [0, 0, 1, 1], [], []>} : vector<8x4xbf16>, vector<4x32xbf16>, vector<8x32xf32> -> vector<8x32xf32>
    %19 = vector.broadcast %6 : vector<1x32xf32> to vector<8x32xf32>
    %20 = arith.addf %18, %19 : vector<8x32xf32>
    %21 = arith.mulf %12, %17 : vector<8x32xf32>
    %cst_17 = arith.constant dense<0.000000e+00> : vector<8xf32>
    %22 = vector.multi_reduction <add>, %21, %cst_17 [1] : vector<8x32xf32> to vector<8xf32>
    %23 = vector.shape_cast %22 : vector<8xf32> to vector<8x1xf32>
    %cst_18 = arith.constant 0.176776692 : f32
    %24 = vector.broadcast %cst_18 : f32 to vector<8x1xf32>
    %25 = arith.mulf %23, %24 : vector<8x1xf32>
    %26 = vector.extract_strided_slice %0 {offsets = [0, 8], sizes = [8, 4], strides = [1, 1]} : vector<8x16xf32> to vector<8x4xf32>
    %27 = arith.truncf %26 : vector<8x4xf32> to vector<8x4xbf16>
    %cst_19 = arith.constant dense<0.000000e+00> : vector<8x32xf32>
    %28 = tpu.matmul %27, %3, %cst_19 {dimension_numbers = #tpu.dot_dimension_numbers<[1], [0], [0], [1], [0, 0, 1, 1], [], []>} : vector<8x4xbf16>, vector<4x32xbf16>, vector<8x32xf32> -> vector<8x32xf32>
    %29 = vector.broadcast %5 : vector<1x32xf32> to vector<8x32xf32>
    %30 = arith.addf %28, %29 : vector<8x32xf32>
    %cst_20 = arith.constant dense<0.000000e+00> : vector<8x32xf32>
    %31 = tpu.matmul %27, %4, %cst_20 {dimension_numbers = #tpu.dot_dimension_numbers<[1], [0], [0], [1], [0, 0, 1, 1], [], []>} : vector<8x4xbf16>, vector<4x32xbf16>, vector<8x32xf32> -> vector<8x32xf32>
    %32 = vector.broadcast %6 : vector<1x32xf32> to vector<8x32xf32>
    %33 = arith.addf %31, %32 : vector<8x32xf32>
    %34 = arith.mulf %12, %30 : vector<8x32xf32>
    %cst_21 = arith.constant dense<0.000000e+00> : vector<8xf32>
    %35 = vector.multi_reduction <add>, %34, %cst_21 [1] : vector<8x32xf32> to vector<8xf32>
    %36 = vector.shape_cast %35 : vector<8xf32> to vector<8x1xf32>
    %cst_22 = arith.constant 0.176776692 : f32
    %37 = vector.broadcast %cst_22 : f32 to vector<8x1xf32>
    %38 = arith.mulf %36, %37 : vector<8x1xf32>
    %39 = vector.extract_strided_slice %0 {offsets = [0, 12], sizes = [8, 4], strides = [1, 1]} : vector<8x16xf32> to vector<8x4xf32>
    %40 = arith.truncf %39 : vector<8x4xf32> to vector<8x4xbf16>
    %cst_23 = arith.constant dense<0.000000e+00> : vector<8x32xf32>
    %41 = tpu.matmul %40, %3, %cst_23 {dimension_numbers = #tpu.dot_dimension_numbers<[1], [0], [0], [1], [0, 0, 1, 1], [], []>} : vector<8x4xbf16>, vector<4x32xbf16>, vector<8x32xf32> -> vector<8x32xf32>
    %42 = vector.broadcast %5 : vector<1x32xf32> to vector<8x32xf32>
    %43 = arith.addf %41, %42 : vector<8x32xf32>
    %cst_24 = arith.constant dense<0.000000e+00> : vector<8x32xf32>
    %44 = tpu.matmul %40, %4, %cst_24 {dimension_numbers = #tpu.dot_dimension_numbers<[1], [0], [0], [1], [0, 0, 1, 1], [], []>} : vector<8x4xbf16>, vector<4x32xbf16>, vector<8x32xf32> -> vector<8x32xf32>
    %45 = vector.broadcast %6 : vector<1x32xf32> to vector<8x32xf32>
    %46 = arith.addf %44, %45 : vector<8x32xf32>
    %47 = arith.mulf %12, %43 : vector<8x32xf32>
    %cst_25 = arith.constant dense<0.000000e+00> : vector<8xf32>
    %48 = vector.multi_reduction <add>, %47, %cst_25 [1] : vector<8x32xf32> to vector<8xf32>
    %49 = vector.shape_cast %48 : vector<8xf32> to vector<8x1xf32>
    %cst_26 = arith.constant 0.176776692 : f32
    %50 = vector.broadcast %cst_26 : f32 to vector<8x1xf32>
    %51 = arith.mulf %49, %50 : vector<8x1xf32>
    %52 = arith.maximumf %25, %38 : vector<8x1xf32>
    %53 = arith.maximumf %52, %51 : vector<8x1xf32>
    %54 = arith.subf %25, %53 : vector<8x1xf32>
    %55 = math.exp %54 : vector<8x1xf32>
    %56 = arith.subf %38, %53 : vector<8x1xf32>
    %57 = math.exp %56 : vector<8x1xf32>
    %58 = arith.subf %51, %53 : vector<8x1xf32>
    %59 = math.exp %58 : vector<8x1xf32>
    %60 = arith.addf %55, %57 : vector<8x1xf32>
    %61 = arith.addf %60, %59 : vector<8x1xf32>
    %62 = tpu.reciprocal %61 {approx = true} : vector<8x1xf32> -> vector<8x1xf32>
    %63 = arith.mulf %55, %62 : vector<8x1xf32>
    %64 = vector.broadcast %63 : vector<8x1xf32> to vector<8x32xf32>
    %65 = arith.mulf %64, %20 : vector<8x32xf32>
    %66 = arith.mulf %57, %62 : vector<8x1xf32>
    %67 = vector.broadcast %66 : vector<8x1xf32> to vector<8x32xf32>
    %68 = arith.mulf %67, %33 : vector<8x32xf32>
    %69 = arith.addf %65, %68 : vector<8x32xf32>
    %70 = arith.mulf %59, %62 : vector<8x1xf32>
    %71 = vector.broadcast %70 : vector<8x1xf32> to vector<8x32xf32>
    %72 = arith.mulf %71, %46 : vector<8x32xf32>
    %73 = arith.addf %69, %72 : vector<8x32xf32>
    %74 = arith.truncf %73 : vector<8x32xf32> to vector<8x32xbf16>
    %c0_27 = arith.constant 0 : index
    %c0_28 = arith.constant 0 : index
    %75 = vector.load %arg9[%c0_27, %c0_28] : memref<32x32xbf16, #tpu.memory_space<vmem>>, vector<32x32xbf16>
    %cst_29 = arith.constant dense<0.000000e+00> : vector<8x32xf32>
    %76 = tpu.matmul %74, %75, %cst_29 {dimension_numbers = #tpu.dot_dimension_numbers<[1], [0], [0], [1], [0, 0, 1, 1], [], []>} : vector<8x32xbf16>, vector<32x32xbf16>, vector<8x32xf32> -> vector<8x32xf32>
    %77 = arith.truncf %1 : vector<8x2xf32> to vector<8x2xbf16>
    %c0_30 = arith.constant 0 : index
    %c0_31 = arith.constant 0 : index
    %78 = vector.load %arg10[%c0_30, %c0_31] : memref<2x32xbf16, #tpu.memory_space<vmem>>, vector<2x32xbf16>
    %cst_32 = arith.constant dense<0.000000e+00> : vector<8x32xf32>
    %79 = tpu.matmul %77, %78, %cst_32 {dimension_numbers = #tpu.dot_dimension_numbers<[1], [0], [0], [1], [0, 0, 1, 1], [], []>} : vector<8x2xbf16>, vector<2x32xbf16>, vector<8x32xf32> -> vector<8x32xf32>
    %80 = arith.addf %76, %79 : vector<8x32xf32>
    %c0_33 = arith.constant 0 : index
    %c0_34 = arith.constant 0 : index
    %81 = vector.load %arg11[%c0_33, %c0_34] : memref<1x32xf32, #tpu.memory_space<vmem>>, vector<1x32xf32>
    %82 = vector.broadcast %81 : vector<1x32xf32> to vector<8x32xf32>
    %83 = arith.addf %80, %82 : vector<8x32xf32>
    %cst_35 = arith.constant 0.000000e+00 : f32
    %84 = vector.broadcast %cst_35 : f32 to vector<8x32xf32>
    %85 = arith.maximumf %83, %84 : vector<8x32xf32>
    %86 = arith.truncf %85 : vector<8x32xf32> to vector<8x32xbf16>
    %c0_36 = arith.constant 0 : index
    %c0_37 = arith.constant 0 : index
    %87 = vector.load %arg12[%c0_36, %c0_37] : memref<32x32xbf16, #tpu.memory_space<vmem>>, vector<32x32xbf16>
    %cst_38 = arith.constant dense<0.000000e+00> : vector<8x32xf32>
    %88 = tpu.matmul %86, %87, %cst_38 {dimension_numbers = #tpu.dot_dimension_numbers<[1], [0], [0], [1], [0, 0, 1, 1], [], []>} : vector<8x32xbf16>, vector<32x32xbf16>, vector<8x32xf32> -> vector<8x32xf32>
    %c0_39 = arith.constant 0 : index
    %c0_40 = arith.constant 0 : index
    %89 = vector.load %arg13[%c0_39, %c0_40] : memref<1x32xf32, #tpu.memory_space<vmem>>, vector<1x32xf32>
    %90 = vector.broadcast %89 : vector<1x32xf32> to vector<8x32xf32>
    %91 = arith.addf %88, %90 : vector<8x32xf32>
    %cst_41 = arith.constant 0.000000e+00 : f32
    %92 = vector.broadcast %cst_41 : f32 to vector<8x32xf32>
    %93 = arith.maximumf %91, %92 : vector<8x32xf32>
    %c0_42 = arith.constant 0 : index
    %c0_43 = arith.constant 0 : index
    %94 = vector.load %arg14[%c0_42, %c0_43] : memref<1x32xf32, #tpu.memory_space<vmem>>, vector<1x32xf32>
    %95 = vector.broadcast %94 : vector<1x32xf32> to vector<8x32xf32>
    %96 = arith.mulf %93, %95 : vector<8x32xf32>
    %cst_44 = arith.constant dense<0.000000e+00> : vector<8xf32>
    %97 = vector.multi_reduction <add>, %96, %cst_44 [1] : vector<8x32xf32> to vector<8xf32>
    %98 = vector.shape_cast %97 : vector<8xf32> to vector<8x1xf32>
    %c0_45 = arith.constant 0 : index
    %c0_46 = arith.constant 0 : index
    %99 = vector.load %arg15[%c0_45, %c0_46] : memref<1x1xf32, #tpu.memory_space<vmem>>, vector<1x1xf32>
    %100 = vector.broadcast %99 : vector<1x1xf32> to vector<8x1xf32>
    %101 = arith.addf %98, %100 : vector<8x1xf32>
    %c0_47 = arith.constant 0 : index
    %c0_48 = arith.constant 0 : index
    %102 = vector.load %arg16[%c0_47, %c0_48] : memref<8x1xf32, #tpu.memory_space<vmem>>, vector<8x1xf32>
    tpu.vector_store %arg16[%c0_47, %c0_48], %101 {strides = array<i32>} : memref<8x1xf32, #tpu.memory_space<vmem>>, vector<8x1xf32>,
    return
  }
  func.func @transform_0(%arg0: i32) -> (i32, i32) {
    %c0_i32 = arith.constant 0 : i32
    %c0_i32_0 = arith.constant 0 : i32
    return %arg0, %c0_i32 : i32, i32
  }
  func.func @transform_1(%arg0: i32) -> (i32, i32) {
    %c0_i32 = arith.constant 0 : i32
    %c0_i32_0 = arith.constant 0 : i32
    return %arg0, %c0_i32 : i32, i32
  }
  func.func @transform_2(%arg0: i32) -> (i32, i32) {
    %c0_i32 = arith.constant 0 : i32
    %c0_i32_0 = arith.constant 0 : i32
    %c0_i32_1 = arith.constant 0 : i32
    return %c0_i32, %c0_i32_0 : i32, i32
  }
  func.func @transform_3(%arg0: i32) -> (i32, i32) {
    %c0_i32 = arith.constant 0 : i32
    %c0_i32_0 = arith.constant 0 : i32
    %c0_i32_1 = arith.constant 0 : i32
    return %c0_i32, %c0_i32_0 : i32, i32
  }
  func.func @transform_4(%arg0: i32) -> (i32, i32) {
    %c0_i32 = arith.constant 0 : i32
    %c0_i32_0 = arith.constant 0 : i32
    %c0_i32_1 = arith.constant 0 : i32
    return %c0_i32, %c0_i32_0 : i32, i32
  }
  func.func @transform_5(%arg0: i32) -> (i32, i32) {
    %c0_i32 = arith.constant 0 : i32
    %c0_i32_0 = arith.constant 0 : i32
    %c0_i32_1 = arith.constant 0 : i32
    return %c0_i32, %c0_i32_0 : i32, i32
  }
  func.func @transform_6(%arg0: i32) -> (i32, i32) {
    %c0_i32 = arith.constant 0 : i32
    %c0_i32_0 = arith.constant 0 : i32
    %c0_i32_1 = arith.constant 0 : i32
    return %c0_i32, %c0_i32_0 : i32, i32
  }
  func.func @transform_7(%arg0: i32) -> (i32, i32) {
    %c0_i32 = arith.constant 0 : i32
    %c0_i32_0 = arith.constant 0 : i32
    %c0_i32_1 = arith.constant 0 : i32
    return %c0_i32, %c0_i32_0 : i32, i32
  }
  func.func @transform_8(%arg0: i32) -> (i32, i32) {
    %c0_i32 = arith.constant 0 : i32
    %c0_i32_0 = arith.constant 0 : i32
    %c0_i32_1 = arith.constant 0 : i32
    return %c0_i32, %c0_i32_0 : i32, i32
  }
  func.func @transform_9(%arg0: i32) -> (i32, i32) {
    %c0_i32 = arith.constant 0 : i32
    %c0_i32_0 = arith.constant 0 : i32
    %c0_i32_1 = arith.constant 0 : i32
    return %c0_i32, %c0_i32_0 : i32, i32
  }
  func.func @transform_10(%arg0: i32) -> (i32, i32) {
    %c0_i32 = arith.constant 0 : i32
    %c0_i32_0 = arith.constant 0 : i32
    %c0_i32_1 = arith.constant 0 : i32
    return %c0_i32, %c0_i32_0 : i32, i32
  }
  func.func @transform_11(%arg0: i32) -> (i32, i32) {
    %c0_i32 = arith.constant 0 : i32
    %c0_i32_0 = arith.constant 0 : i32
    %c0_i32_1 = arith.constant 0 : i32
    return %c0_i32, %c0_i32_0 : i32, i32
  }
  func.func @transform_12(%arg0: i32) -> (i32, i32) {
    %c0_i32 = arith.constant 0 : i32
    %c0_i32_0 = arith.constant 0 : i32
    %c0_i32_1 = arith.constant 0 : i32
    return %c0_i32, %c0_i32_0 : i32, i32
  }
  func.func @transform_13(%arg0: i32) -> (i32, i32) {
    %c0_i32 = arith.constant 0 : i32
    %c0_i32_0 = arith.constant 0 : i32
    %c0_i32_1 = arith.constant 0 : i32
    return %c0_i32, %c0_i32_0 : i32, i32
  }
  func.func @transform_14(%arg0: i32) -> (i32, i32) {
    %c0_i32 = arith.constant 0 : i32
    %c0_i32_0 = arith.constant 0 : i32
    %c0_i32_1 = arith.constant 0 : i32
    return %c0_i32, %c0_i32_0 : i32, i32
  }
  func.func @transform_15(%arg0: i32) -> (i32, i32) {
    %c0_i32 = arith.constant 0 : i32
    %c0_i32_0 = arith.constant 0 : i32
    return %arg0, %c0_i32 : i32, i32
  }
}

</mosaic_0001>

<llo_original>
// kernel: tpu_custom_call.1
$region0: #{tpu_custom_call.1}
  #allocation0 [shape = 'u32[]', space=smem, size = 0x4, offset = 0x4, fixed_abs, tag = 'smem constant byte address 0x4 - core index']
  #allocation1 [shape = 'u32[72,128]{1,0:T(1,128)}', space=vmem, size = 0x9000, scoped, tag = 'internal scratch']
  #allocation2 [shape = 'f32[1,1]{1,0:T(1,128)S(1)}', space=vmem, size = 0x200, scoped, tag = 'scoped memory for tpu_custom_call.1']
  %s0 = inlined_call_operand.vmem [shape: f32[8,16], index: 0, kind: input, shape index: {}]
  %s1 = inlined_call_operand.vmem [shape: f32[8,2], index: 1, kind: input, shape index: {}]
  %s2 = inlined_call_operand.vmem [shape: bf16[4,32], index: 2, kind: input, shape index: {}]
  %s3 = inlined_call_operand.hbm [shape: f32[1,32], index: 3, kind: input, shape index: {}]
  %s4 = inlined_call_operand.vmem [shape: bf16[4,32], index: 4, kind: input, shape index: {}]
  %s5 = inlined_call_operand.hbm [shape: f32[1,32], index: 5, kind: input, shape index: {}]
  %s6 = inlined_call_operand.vmem [shape: bf16[4,32], index: 6, kind: input, shape index: {}]
  %s7 = inlined_call_operand.vmem [shape: f32[1,32], index: 7, kind: input, shape index: {}]
  %s8 = inlined_call_operand.hbm [shape: bf16[32,32], index: 8, kind: input, shape index: {}]
  %s9 = inlined_call_operand.vmem [shape: bf16[2,32], index: 9, kind: input, shape index: {}]
  %s10 = inlined_call_operand.vmem [shape: f32[1,32], index: 10, kind: input, shape index: {}]
  %s11 = inlined_call_operand.hbm [shape: bf16[32,32], index: 11, kind: input, shape index: {}]
  %s12 = inlined_call_operand.vmem [shape: f32[1,32], index: 12, kind: input, shape index: {}]
  %s13 = inlined_call_operand.vmem [shape: f32[1,32], index: 13, kind: input, shape index: {}]
  %s14 = inlined_call_operand.<no memory space> [shape: f32[1,1], index: 14, kind: input, shape index: {}]
  %s15 = inlined_call_operand.vmem [shape: f32[8,1], index: 15, kind: output, shape index: {}]
  %s16 = sld [smem:[#allocation0]]
  $region86: #{tpu_custom_call.1} parent=0
    _
  %s18 = ssub.s32 1, %s16
  %s19 = scalar_select 0, %s18, %s16
  %v20 = vstv %s14
  %21 = vst [vmem:[#allocation2] sm:$0x1] %v20
  $region1: #{tpu_custom_call.1} parent=0
    #allocation3 [shape = 'u8[512]{0}', space=vmem, size = 0x400, scoped, tag = 'input window, operand 3, single buffered']
    #allocation4 [shape = 's32[1]{0}', space=sflag, size = 0x4, scoped, tag = 'scoped memory for tpu_custom_call.1']
    #allocation5 [shape = 'u8[512]{0}', space=vmem, size = 0x400, scoped, tag = 'input window, operand 5, single buffered']
    #allocation6 [shape = 's32[1]{0}', space=sflag, size = 0x4, scoped, tag = 'scoped memory for tpu_custom_call.1']
    #allocation7 [shape = 'u8[8192]{0}', space=vmem, size = 0x2000, scoped, tag = 'input window, operand 8, single buffered']
    #allocation8 [shape = 'u8[8192]{0}', space=vmem, size = 0x2000, scoped, tag = 'input window, operand 11, single buffered']
    #allocation9 [shape = 's32[1]{0}', space=sflag, size = 0x4, scoped, tag = 'scoped memory for tpu_custom_call.1']
    %22 = vsyncpa [#allocation4], 0
    %23 = vsyncpa [#allocation6], 0
    %24 = vsyncpa [#allocation9], 0
    // Predicated region
    $region2: #{tpu_custom_call.1} parent=1 // pred_check
      _
    $region3: #{tpu_custom_call.1} parent=1 // pred_check_branch
      %26 = sbr.rel (0) target = $region5
    $region4: #{tpu_custom_call.1} parent=1 // pred_region
      _
    $region5: #{tpu_custom_call.1} parent=1 // pred_fallthru
      _
    // Predicated region
    $region6: #{tpu_custom_call.1} parent=1 // pred_check
      _
    $region7: #{tpu_custom_call.1} parent=1 // pred_check_branch
      %28 = sbr.rel (0) target = $region9
    $region8: #{tpu_custom_call.1} parent=1 // pred_region
      _
    $region9: #{tpu_custom_call.1} parent=1 // pred_fallthru
      _
    // Predicated region
    $region10: #{tpu_custom_call.1} parent=1 // pred_check
      _
    $region11: #{tpu_custom_call.1} parent=1 // pred_check_branch
      %30 = sbr.rel (0) target = $region13
    $region12: #{tpu_custom_call.1} parent=1 // pred_region
      _
    $region13: #{tpu_custom_call.1} parent=1 // pred_fallthru
      _
    // Predicated region
    $region14: #{tpu_custom_call.1} parent=1 // pred_check
      _
    $region15: #{tpu_custom_call.1} parent=1 // pred_check_branch
      %32 = sbr.rel (0) target = $region17
    $region16: #{tpu_custom_call.1} parent=1 // pred_region
      %34 = vsyncadd [#allocation4], 0
      %s36 = sshll.u32 %s3, 4
      %s37 = int_to_ptr.hbm [resolvable:$true] %s36
      %s38 = sshll.u32 [#allocation3], 4
      %s39 = int_to_ptr.vmem [resolvable:$true] %s38
      %41 = dma.hbm_to_vmem [thread:$0]  %s37, 16, %s39, [#allocation4]
    $region17: #{tpu_custom_call.1} parent=1 // pred_fallthru
      _
    // Predicated region
    $region18: #{tpu_custom_call.1} parent=1 // pred_check
      _
    $region19: #{tpu_custom_call.1} parent=1 // pred_check_branch
      %43 = sbr.rel (0) target = $region21
    $region20: #{tpu_custom_call.1} parent=1 // pred_region
      _
    $region21: #{tpu_custom_call.1} parent=1 // pred_fallthru
      _
    // Predicated region
    $region22: #{tpu_custom_call.1} parent=1 // pred_check
      _
    $region23: #{tpu_custom_call.1} parent=1 // pred_check_branch
      %45 = sbr.rel (0) target = $region25
    $region24: #{tpu_custom_call.1} parent=1 // pred_region
      %47 = vsyncadd [#allocation6], 0
      %s49 = sshll.u32 %s5, 4
      %s50 = int_to_ptr.hbm [resolvable:$true] %s49
      %s51 = sshll.u32 [#allocation5], 4
      %s52 = int_to_ptr.vmem [resolvable:$true] %s51
      %54 = dma.hbm_to_vmem [thread:$0]  %s50, 16, %s52, [#allocation6]
    $region25: #{tpu_custom_call.1} parent=1 // pred_fallthru
      _
    // Predicated region
    $region26: #{tpu_custom_call.1} parent=1 // pred_check
      _
    $region27: #{tpu_custom_call.1} parent=1 // pred_check_branch
      %56 = sbr.rel (0) target = $region29
    $region28: #{tpu_custom_call.1} parent=1 // pred_region
      _
    $region29: #{tpu_custom_call.1} parent=1 // pred_fallthru
      _
    // Predicated region
    $region30: #{tpu_custom_call.1} parent=1 // pred_check
      _
    $region31: #{tpu_custom_call.1} parent=1 // pred_check_branch
      %58 = sbr.rel (0) target = $region33
    $region32: #{tpu_custom_call.1} parent=1 // pred_region
      _
    $region33: #{tpu_custom_call.1} parent=1 // pred_fallthru
      _
    // Predicated region
    $region34: #{tpu_custom_call.1} parent=1 // pred_check
      _
    $region35: #{tpu_custom_call.1} parent=1 // pred_check_branch
      %60 = sbr.rel (0) target = $region37
    $region36: #{tpu_custom_call.1} parent=1 // pred_region
      %62 = vsyncadd [#allocation6], 0
      %s63 = sshll.u32 %s8, 4
      %s64 = int_to_ptr.hbm [resolvable:$true] %s63
      %s65 = sshll.u32 [#allocation7], 4
      %s66 = int_to_ptr.vmem [resolvable:$true] %s65
      %71 = dma.hbm_to_vmem [thread:$0]  %s64, 256, %s66, [#allocation6], 64, 64, 4
    $region37: #{tpu_custom_call.1} parent=1 // pred_fallthru
      _
    // Predicated region
    $region38: #{tpu_custom_call.1} parent=1 // pred_check
      _
    $region39: #{tpu_custom_call.1} parent=1 // pred_check_branch
      %73 = sbr.rel (0) target = $region41
    $region40: #{tpu_custom_call.1} parent=1 // pred_region
      _
    $region41: #{tpu_custom_call.1} parent=1 // pred_fallthru
      _
    // Predicated region
    $region42: #{tpu_custom_call.1} parent=1 // pred_check
      _
    $region43: #{tpu_custom_call.1} parent=1 // pred_check_branch
      %75 = sbr.rel (0) target = $region45
    $region44: #{tpu_custom_call.1} parent=1 // pred_region
      _
    $region45: #{tpu_custom_call.1} parent=1 // pred_fallthru
      _
    // Predicated region
    $region46: #{tpu_custom_call.1} parent=1 // pred_check
      _
    $region47: #{tpu_custom_call.1} parent=1 // pred_check_branch
      %77 = sbr.rel (0) target = $region49
    $region48: #{tpu_custom_call.1} parent=1 // pred_region
      %79 = vsyncadd [#allocation9], 0
      %s80 = sshll.u32 %s11, 4
      %s81 = int_to_ptr.hbm [resolvable:$true] %s80
      %s82 = sshll.u32 [#allocation8], 4
      %s83 = int_to_ptr.vmem [resolvable:$true] %s82
      %88 = dma.hbm_to_vmem [thread:$0]  %s81, 256, %s83, [#allocation9], 64, 64, 4
    $region49: #{tpu_custom_call.1} parent=1 // pred_fallthru
      _
    // Predicated region
    $region50: #{tpu_custom_call.1} parent=1 // pred_check
      _
    $region51: #{tpu_custom_call.1} parent=1 // pred_check_branch
      %90 = sbr.rel (0) target = $region53
    $region52: #{tpu_custom_call.1} parent=1 // pred_region
      _
    $region53: #{tpu_custom_call.1} parent=1 // pred_fallthru
      _
    // Predicated region
    $region54: #{tpu_custom_call.1} parent=1 // pred_check
      _
    $region55: #{tpu_custom_call.1} parent=1 // pred_check_branch
      %92 = sbr.rel (0) target = $region57
    $region56: #{tpu_custom_call.1} parent=1 // pred_region
      _
    $region57: #{tpu_custom_call.1} parent=1 // pred_fallthru
      _
    // Predicated region
    $region58: #{tpu_custom_call.1} parent=1 // pred_check
      _
    $region59: #{tpu_custom_call.1} parent=1 // pred_check_branch
      %94 = sbr.rel (0) target = $region61
    $region60: #{tpu_custom_call.1} parent=1 // pred_region
      _
    $region61: #{tpu_custom_call.1} parent=1 // pred_fallthru
      _
    // Predicated region
    $region62: #{tpu_custom_call.1} parent=1 // pred_check
      _
    $region63: #{tpu_custom_call.1} parent=1 // pred_check_branch
      %96 = sbr.rel (0) target = $region65
    $region64: #{tpu_custom_call.1} parent=1 // pred_region
      %98 = dma.done [#allocation4], 16
    $region65: #{tpu_custom_call.1} parent=1 // pred_fallthru
      _
    // Predicated region
    $region66: #{tpu_custom_call.1} parent=1 // pred_check
      _
    $region67: #{tpu_custom_call.1} parent=1 // pred_check_branch
      %100 = sbr.rel (0) target = $region69
    $region68: #{tpu_custom_call.1} parent=1 // pred_region
      %102 = dma.done [#allocation6], 16
    $region69: #{tpu_custom_call.1} parent=1 // pred_fallthru
      _
    // Predicated region
    $region70: #{tpu_custom_call.1} parent=1 // pred_check
      _
    $region71: #{tpu_custom_call.1} parent=1 // pred_check_branch
      %104 = sbr.rel (0) target = $region73
    $region72: #{tpu_custom_call.1} parent=1 // pred_region
      %106 = dma.done [#allocation6], 256
    $region73: #{tpu_custom_call.1} parent=1 // pred_fallthru
      _
    // Predicated region
    $region74: #{tpu_custom_call.1} parent=1 // pred_check
      _
    $region75: #{tpu_custom_call.1} parent=1 // pred_check_branch
      %108 = sbr.rel (0) target = $region77
    $region76: #{tpu_custom_call.1} parent=1 // pred_region
      %110 = dma.done [#allocation9], 256
    $region77: #{tpu_custom_call.1} parent=1 // pred_fallthru
      _
    %v112 = vld [vmem:[%s0] sm:$0xff]
    %v113 = vld [vmem:[%s1] sm:$0xff]
    %v114 = vld [vmem:[%s2] sm:$0x3]
    %v115 = vld [vmem:[%s4] sm:$0x3]
    %v116 = vld [vmem:[%s6] sm:$0x3]
    %v117 = vld [vmem:[#allocation5] sm:$0x1]
    %v118 = vld [vmem:[%s7] sm:$0x1]
    %v119 = vpack.c.bf16 %v112, %v112
    %v120 = vld [vmem:[#allocation3] sm:$0x1]
    %v122 = vperm.slane %v120, 0
    %vm124 = vcmask 31744
    %v126 = vsel %vm124, %v119, 0
    %vm128 = vcmask 1041408
    %v130 = vsel %vm128, %v114, 0
    %132 = vmatpush.bf16.msra.mxu0 0
    %133 = vmatpush.bf16.msra.mxu0 0
    %134 = vmatpush.bf16.msra.mxu0 0
    %135 = vmatpush.bf16.msra.mxu0 0
    %136 = vmatpush.bf16.msra.mxu0 0
    %137 = vmatpush.bf16.msra.mxu0 0
    %138 = vmatpush.bf16.msra.mxu0 0
    %139 = vmatpush.bf16.msra.mxu0 %v130
    %140 = vmatmul.bf16.gmra.mxu0 %v126
    %v141 = vpop.f32.mrf.mxu0
    %v142 = vadd.f32 %v122, %v141
    %v143 = vpop.f32.mrf.mxu0
    %144 = vdwg.mxu0
    %v146 = vperm.slane %v117, 0
    %149 = vrot.lane.b32.xlu0 %v119, 124
    %v150 = vpop.permute.xlu0 %149
    %v152 = vsel %vm124, %v150, 0
    %v155 = vsel %vm128, %v115, 0
    %157 = vmatpush.bf16.msra.mxu0 0
    %158 = vmatpush.bf16.msra.mxu0 0
    %159 = vmatpush.bf16.msra.mxu0 0
    %160 = vmatpush.bf16.msra.mxu0 0
    %161 = vmatpush.bf16.msra.mxu0 0
    %162 = vmatpush.bf16.msra.mxu0 0
    %163 = vmatpush.bf16.msra.mxu0 0
    %164 = vmatpush.bf16.msra.mxu0 %v155
    %165 = vmatmul.bf16.gmra.mxu0 %v152
    %v166 = vpop.f32.mrf.mxu0
    %v167 = vadd.f32 %v146, %v166
    %v168 = vpop.f32.mrf.mxu0
    %169 = vdwg.mxu0
    %v171 = vperm.slane %v118, 0
    %v174 = vsel %vm128, %v116, 0
    %176 = vmatpush.bf16.msra.mxu0 0
    %177 = vmatpush.bf16.msra.mxu0 0
    %178 = vmatpush.bf16.msra.mxu0 0
    %179 = vmatpush.bf16.msra.mxu0 0
    %180 = vmatpush.bf16.msra.mxu0 0
    %181 = vmatpush.bf16.msra.mxu0 0
    %182 = vmatpush.bf16.msra.mxu0 0
    %183 = vmatpush.bf16.msra.mxu0 %v174
    %184 = vmatmul.bf16.gmra.mxu0 %v152
    %v185 = vpop.f32.mrf.mxu0
    %v186 = vadd.f32 %v171, %v185
    %v187 = vpop.f32.mrf.mxu0
    %188 = vdwg.mxu0
    %v189 = vmul.f32 %v142, %v167
    %vm190 = vcmask 261120
    %v191 = vsel %vm190, %v189, 0.0
    %192 = vadd.xlane.f32.xlu0 %v191
    %v193 = vpop.xlane.xlu0 %192
    %v194 = vmul.f32 %v193, 0.17677669
    %195 = vrot.lane.b32.xlu0 %v119, 120
    %v196 = vpop.permute.xlu0 %195
    %v198 = vsel %vm124, %v196, 0
    %200 = vmatpush.bf16.msra.mxu0 0
    %201 = vmatpush.bf16.msra.mxu0 0
    %202 = vmatpush.bf16.msra.mxu0 0
    %203 = vmatpush.bf16.msra.mxu0 0
    %204 = vmatpush.bf16.msra.mxu0 0
    %205 = vmatpush.bf16.msra.mxu0 0
    %206 = vmatpush.bf16.msra.mxu0 0
    %207 = vmatpush.bf16.msra.mxu0 %v155
    %208 = vmatmul.bf16.gmra.mxu0 %v198
    %v209 = vpop.f32.mrf.mxu0
    %v210 = vadd.f32 %v146, %v209
    %v211 = vpop.f32.mrf.mxu0
    %212 = vdwg.mxu0
    %213 = vmatpush.bf16.msra.mxu0 0
    %214 = vmatpush.bf16.msra.mxu0 0
    %215 = vmatpush.bf16.msra.mxu0 0
    %216 = vmatpush.bf16.msra.mxu0 0
    %217 = vmatpush.bf16.msra.mxu0 0
    %218 = vmatpush.bf16.msra.mxu0 0
    %219 = vmatpush.bf16.msra.mxu0 0
    %220 = vmatpush.bf16.msra.mxu0 %v174
    %221 = vmatmul.bf16.gmra.mxu0 %v198
    %v222 = vpop.f32.mrf.mxu0
    %v223 = vadd.f32 %v171, %v222
    %v224 = vpop.f32.mrf.mxu0
    %225 = vdwg.mxu0
    %v226 = vmul.f32 %v142, %v210
    %v227 = vsel %vm190, %v226, 0.0
    %228 = vadd.xlane.f32.xlu0 %v227
    %v229 = vpop.xlane.xlu0 %228
    %v230 = vmul.f32 %v229, 0.17677669
    %231 = vrot.lane.b32.xlu0 %v119, 116
    %v232 = vpop.permute.xlu0 %231
    %v234 = vsel %vm124, %v232, 0
    %236 = vmatpush.bf16.msra.mxu0 0
    %237 = vmatpush.bf16.msra.mxu0 0
    %238 = vmatpush.bf16.msra.mxu0 0
    %239 = vmatpush.bf16.msra.mxu0 0
    %240 = vmatpush.bf16.msra.mxu0 0
    %241 = vmatpush.bf16.msra.mxu0 0
    %242 = vmatpush.bf16.msra.mxu0 0
    %243 = vmatpush.bf16.msra.mxu0 %v155
    %244 = vmatmul.bf16.gmra.mxu0 %v234
    %v245 = vpop.f32.mrf.mxu0
    %v246 = vadd.f32 %v146, %v245
    %v247 = vpop.f32.mrf.mxu0
    %248 = vdwg.mxu0
    %249 = vmatpush.bf16.msra.mxu0 0
    %250 = vmatpush.bf16.msra.mxu0 0
    %251 = vmatpush.bf16.msra.mxu0 0
    %252 = vmatpush.bf16.msra.mxu0 0
    %253 = vmatpush.bf16.msra.mxu0 0
    %254 = vmatpush.bf16.msra.mxu0 0
    %255 = vmatpush.bf16.msra.mxu0 0
    %256 = vmatpush.bf16.msra.mxu0 %v174
    %257 = vmatmul.bf16.gmra.mxu0 %v234
    %v258 = vpop.f32.mrf.mxu0
    %v259 = vadd.f32 %v171, %v258
    %v260 = vpop.f32.mrf.mxu0
    %261 = vdwg.mxu0
    %v262 = vmul.f32 %v142, %v246
    %v263 = vsel %vm190, %v262, 0.0
    %264 = vadd.xlane.f32.xlu0 %v263
    %v265 = vpop.xlane.xlu0 %264
    %v266 = vmul.f32 %v265, 0.17677669
    %v267 = vmax.f32 %v194, %v230
    %v268 = vmax.f32 %v267, %v266
    %v269 = vsub.f32 %v194, %v268
    %v270 = vmul.f32 %v269, 1.442695
    %v271 = vpow.pop %v270
    %v272 = vsub.f32 %v230, %v268
    %v273 = vmul.f32 %v272, 1.442695
    %v274 = vpow.pop %v273
    %v275 = vsub.f32 %v266, %v268
    %v276 = vmul.f32 %v275, 1.442695
    %v277 = vpow.pop %v276
    %v278 = vadd.f32 %v271, %v274
    %v279 = vadd.f32 %v278, %v277
    %v280 = vrcp.pop %v279
    %v281 = vmul.f32 %v271, %v280
    %v282 = vmul.f32 %v281, %v186
    %v283 = vmul.f32 %v274, %v280
    %v284 = vmul.f32 %v283, %v223
    %v285 = vadd.f32 %v282, %v284
    %v286 = vmul.f32 %v277, %v280
    %v287 = vmul.f32 %v286, %v259
    %v288 = vadd.f32 %v285, %v287
    %v289 = vpack.c.bf16 %v288, %v288
    %v290 = vld [vmem:[#allocation7] sm:$0xf]
    %v291 = vld [vmem:[#allocation7 + $0x4] sm:$0xf]
    %v292 = vld [vmem:[#allocation7 + $0x8] sm:$0xf]
    %v293 = vld [vmem:[#allocation7 + $0xc] sm:$0xf]
    %v294 = vpack.c.bf16 %v113, %v113
    %v295 = vld [vmem:[%s9] sm:$0x1]
    %vm296 = vcmask 15360
    %v298 = vsel %vm296, %v294, 0
    %vm300 = vcmask 1040384
    %v302 = vsel %vm300, %v295, 0
    %304 = vmatpush.bf16.msra.mxu0 0
    %305 = vmatpush.bf16.msra.mxu0 0
    %306 = vmatpush.bf16.msra.mxu0 0
    %307 = vmatpush.bf16.msra.mxu0 0
    %308 = vmatpush.bf16.msra.mxu0 0
    %309 = vmatpush.bf16.msra.mxu0 0
    %310 = vmatpush.bf16.msra.mxu0 0
    %311 = vmatpush.bf16.msra.mxu0 %v302
    %312 = vmatmul.bf16.gmra.mxu0 %v298
    %v313 = vpop.f32.mrf.mxu0
    %v314 = vadd.f32 0.0, %v313
    %v315 = vpop.f32.mrf.mxu0
    %316 = vdwg.mxu0
    %v321 = vunpack.c.l.b16 %v290
    %v322 = vunpack.c.l.b16 %v291
    %v323 = vunpack.c.l.b16 %v292
    %v324 = vunpack.c.l.b16 %v293
    %v325 = vpack.c.b16 %v322, %v321
    %v326 = vpack.c.b16 %v324, %v323
    %v330 = vsel %vm190, %v289, 0
    %332 = vmatpush.bf16.msra.mxu0 0
    %333 = vmatpush.bf16.msra.mxu0 0
    %334 = vmatpush.bf16.msra.mxu0 0
    %335 = vmatpush.bf16.msra.mxu0 0
    %336 = vmatpush.bf16.msra.mxu0 0
    %337 = vmatpush.bf16.msra.mxu0 0
    %338 = vmatpush.bf16.msra.mxu0 %v326
    %339 = vmatpush.bf16.msra.mxu0 %v325
    %340 = vmatmul.bf16.gmra.mxu0 %v330
    %v341 = vpop.f32.mrf.mxu0
    %v342 = vadd.f32 %v314, %v341
    %v343 = vpop.f32.mrf.mxu0
    %344 = vdwg.mxu0
    %v345 = vld [vmem:[%s10] sm:$0x1]
    %v347 = vperm.slane %v345, 0
    %v349 = vadd.f32 %v342, %v347
    %v350 = vmax.f32 %v349, 0.0
    %v351 = vpack.c.bf16 %v350, %v350
    %v352 = vld [vmem:[#allocation8] sm:$0xf]
    %v353 = vld [vmem:[#allocation8 + $0x4] sm:$0xf]
    %v354 = vld [vmem:[#allocation8 + $0x8] sm:$0xf]
    %v355 = vld [vmem:[#allocation8 + $0xc] sm:$0xf]
    %v356 = vld [vmem:[%s12] sm:$0x1]
    %v358 = vperm.slane %v356, 0
    %v364 = vunpack.c.l.b16 %v352
    %v365 = vunpack.c.l.b16 %v353
    %v366 = vunpack.c.l.b16 %v354
    %v367 = vunpack.c.l.b16 %v355
    %v368 = vpack.c.b16 %v365, %v364
    %v369 = vpack.c.b16 %v367, %v366
    %v373 = vsel %vm190, %v351, 0
    %375 = vmatpush.bf16.msra.mxu0 0
    %376 = vmatpush.bf16.msra.mxu0 0
    %377 = vmatpush.bf16.msra.mxu0 0
    %378 = vmatpush.bf16.msra.mxu0 0
    %379 = vmatpush.bf16.msra.mxu0 0
    %380 = vmatpush.bf16.msra.mxu0 0
    %381 = vmatpush.bf16.msra.mxu0 %v369
    %382 = vmatpush.bf16.msra.mxu0 %v368
    %383 = vmatmul.bf16.gmra.mxu0 %v373
    %v384 = vpop.f32.mrf.mxu0
    %v385 = vadd.f32 %v358, %v384
    %v386 = vpop.f32.mrf.mxu0
    %387 = vdwg.mxu0
    %v388 = vmax.f32 %v385, 0.0
    %v389 = vld [vmem:[%s13] sm:$0x1]
    %v391 = vperm.slane %v389, 0
    %v393 = vmul.f32 %v388, %v391
    %v394 = vsel %vm190, %v393, 0.0
    %395 = vadd.xlane.f32.xlu0 %v394
    %v396 = vpop.xlane.xlu0 %395
    %v397 = vld [vmem:[#allocation2] sm:$0x1]
    %v399 = vperm.slane %v397, 0
    %v401 = vadd.f32 %v396, %v399
    %vm402 = vcmask 7168
    %403 = vst.msk [vmem:[%s15] sm:$0xff] %vm402, %v401
    // Predicated region
    $region78: #{tpu_custom_call.1} parent=1 // pred_check
      _
    $region79: #{tpu_custom_call.1} parent=1 // pred_check_branch
      %405 = sbr.rel (0) target = $region81
    $region80: #{tpu_custom_call.1} parent=1 // pred_region
      _
    $region81: #{tpu_custom_call.1} parent=1 // pred_fallthru
      _
    // Predicated region
    $region82: #{tpu_custom_call.1} parent=1 // pred_check
      _
    $region83: #{tpu_custom_call.1} parent=1 // pred_check_branch
      %407 = sbr.rel (0) target = $region85
    $region84: #{tpu_custom_call.1} parent=1 // pred_region
      _
    $region85: #{tpu_custom_call.1} parent=1 // pred_fallthru
      _
    %408 = vsyncpa [#allocation4], 1
    %409 = vsyncpa [#allocation6], 1
    %410 = vsyncpa [#allocation9], 1

</llo_original>
